<compile_context>
chip_gen: v5e
topology: v5e:2x2
jax: 0.10.0
libtpu: 0.0.40
codegen_flags: <defaults>
</compile_context>

<pallas_src>
import functools

import jax
import jax.numpy as jnp
from jax.experimental import pallas as pl
from jax.experimental.pallas import tpu as pltpu


_FUSE_VMEM_BUDGET = 16 * 1024 * 1024   # v7x-safe (32 MiB scoped default)
_SPLIT_VMEM_BUDGET = 24 * 1024 * 1024


def _pool_reduce(y, pool, inv_hw):
    """Global pooling over the HW (lane) axis of a (C, HW) f32 block."""
    if pool == "avgpool":
        return jnp.sum(y, axis=1, keepdims=True) * inv_hw
    return jnp.max(y, axis=1, keepdims=True)          # maxpool


def _fc_scale_from_pooled(pooled, w1_ref, b1_ref, w2_ref, b2_ref):
    """pooled (C,1) -> fc1 -> ReLU -> fc2 -> sigmoid -> scale (Cout_tile,1)."""
    h = jnp.dot(w1_ref[...], pooled, preferred_element_type=jnp.float32)
    h = jnp.maximum(h + b1_ref[...], 0.0)              # delta = ReLU
    s = jnp.dot(w2_ref[...], h, preferred_element_type=jnp.float32)
    return jax.nn.sigmoid(s + b2_ref[...])              # sigma = Sigmoid


# ----------------------------------------------------------------------------
# Fused path: one kernel per batch row.  grid=(B,), everything VMEM-resident.
# ----------------------------------------------------------------------------
def _se_fused_transition_kernel(x_ref, w_ref, shift_ref, w1_ref, b1_ref,
                                w2_ref, b2_ref, o_ref, *, pool, inv_hw):
    # 1x1 conv with BN scale folded into the weight; only the shift remains.
    y = jnp.dot(w_ref[...], x_ref[...], preferred_element_type=jnp.float32)
    y = jnp.maximum(y + shift_ref[...], 0.0)            # (Cout, HW), f32
    pooled = _pool_reduce(y, pool, inv_hw)               # (Cout, 1)
    scale = _fc_scale_from_pooled(pooled, w1_ref, b1_ref, w2_ref, b2_ref)
    o_ref[...] = (y * scale).astype(o_ref.dtype)


def _se_fused_identity_kernel(x_ref, w1_ref, b1_ref, w2_ref, b2_ref, o_ref,
                              *, pool, inv_hw):
    y = x_ref[...].astype(jnp.float32)                   # (C, HW)
    pooled = _pool_reduce(y, pool, inv_hw)
    scale = _fc_scale_from_pooled(pooled, w1_ref, b1_ref, w2_ref, b2_ref)
    o_ref[...] = (y * scale).astype(o_ref.dtype)


# ----------------------------------------------------------------------------
# Split (fallback) path: channel-tiled, grid=(B, Cout//tco), all parallel.
# ----------------------------------------------------------------------------
def _split_transition_pool_kernel(x_ref, w_ref, shift_ref, y_ref, pooled_ref,
                                  *, pool, inv_hw):
    y = jnp.dot(w_ref[...], x_ref[...], preferred_element_type=jnp.float32)
    y = jnp.maximum(y + shift_ref[...], 0.0)             # (tco, HW)
    y_ref[...] = y.astype(y_ref.dtype)
    pooled_ref[...] = _pool_reduce(y, pool, inv_hw)       # (tco, 1), full HW seen


def _split_pool_kernel(x_ref, pooled_ref, *, pool, inv_hw):
    pooled_ref[...] = _pool_reduce(x_ref[...].astype(jnp.float32), pool, inv_hw)


def _split_fc_rescale_kernel(y_ref, pooled_ref, w1_ref, b1_ref, w2t_ref,
                             b2t_ref, o_ref):
    # FC is recomputed per channel tile (w2/b2 are the (tco, .) slices) —
    # Csq*Cout MACs, negligible; avoids a separate FC launch + round trip.
    scale = _fc_scale_from_pooled(pooled_ref[...], w1_ref, b1_ref,
                                  w2t_ref, b2t_ref)       # (tco, 1)
    o_ref[...] = (y_ref[...].astype(jnp.float32) * scale).astype(o_ref.dtype)


# ----------------------------------------------------------------------------
# Helpers
# ----------------------------------------------------------------------------
def _pick_cout_tile(c_out, c_in, hw, x_bytes, budget_bytes):
    """Largest channel tile (multiple of 8 dividing c_out, or c_out itself)
    whose per-grid-step working set stays under the VMEM budget."""
    legal = [d for d in range(8, c_out + 1, 8) if c_out % d == 0]
    if not legal:
        return c_out
    fixed = 2 * c_in * hw * x_bytes           # x block, double-buffered
    per_c = hw * (4 * x_bytes + 8)            # y3 in/out blocks (2-buf) + f32 temps
    for d in sorted(legal, reverse=True):
        if fixed + per_c * d <= budget_bytes:
            return d
    return legal[0]


def _compiler_params(dims, est_bytes):
    kwargs = {}
    if est_bytes > 12 * 1024 * 1024:
        kwargs["vmem_limit_bytes"] = int(min(max(est_bytes * 5 // 4,
                                                 16 * 1024 * 1024),
                                             40 * 1024 * 1024))
    return pltpu.CompilerParams(dimension_semantics=dims, **kwargs)


# ----------------------------------------------------------------------------
# Module wrapper
# ----------------------------------------------------------------------------
class SqueezeExcitationPallas:
    def __init__(self, in_channels, out_channels, reduction=4, pool="avgpool",
                 key=None, fuse_vmem_budget_bytes=_FUSE_VMEM_BUDGET,
                 split_vmem_budget_bytes=_SPLIT_VMEM_BUDGET,
                 split_cout_tile=None):
        if pool not in ("avgpool", "maxpool"):
            raise ValueError("pool must be 'avgpool' or 'maxpool'")
        self.in_channels = in_channels
        self.out_channels = out_channels
        self.pool = pool
        self.fuse_vmem_budget_bytes = fuse_vmem_budget_bytes
        self.split_vmem_budget_bytes = split_vmem_budget_bytes
        self.split_cout_tile = split_cout_tile
        self.csq = max(out_channels // reduction, 1)
        csq = self.csq

        if key is None:
            key = jax.random.PRNGKey(0)
        k_t, k1, kb1, k2, kb2 = jax.random.split(key, 5)

        if in_channels != out_channels:
            # 1x1 conv weight (Cout, Cin); BN at PyTorch init values (eval mode).
            self.wt = jax.random.normal(k_t, (out_channels, in_channels),
                                        jnp.float32) * 0.1
            gamma = jnp.ones((out_channels,), jnp.float32)
            beta = jnp.zeros((out_channels,), jnp.float32)
            running_mean = jnp.zeros((out_channels,), jnp.float32)
            running_var = jnp.ones((out_channels,), jnp.float32)
            eps = 1e-5
            self.bn_scale = gamma / jnp.sqrt(running_var + eps)       # (Cout,)
            self.bn_shift = beta - running_mean * self.bn_scale       # (Cout,)
            # Fold bn_scale into the conv weight; keep only the shift column.
            self._w_fold = self.wt * self.bn_scale[:, None]           # (Cout,Cin)
            self._shift_col = self.bn_shift.reshape(out_channels, 1)  # (Cout,1)

        # fc1: Conv2d(Cout, Csq, 1) -> weight (Csq, Cout), bias (Csq,)
        self.w1 = jax.random.normal(k1, (csq, out_channels), jnp.float32) * 0.1
        self.b1 = jax.random.normal(kb1, (csq,), jnp.float32) * 0.1
        # fc2: Conv2d(Csq, Cout, 1) -> weight (Cout, Csq), bias (Cout,)
        self.w2 = jax.random.normal(k2, (out_channels, csq), jnp.float32) * 0.1
        self.b2 = jax.random.normal(kb2, (out_channels,), jnp.float32) * 0.1
        # Column layouts used by the kernels (FC runs on (C,1) columns).
        self._b1_col = self.b1.reshape(csq, 1)
        self._b2_col = self.b2.reshape(out_channels, 1)

    # -------------------------- forward --------------------------------
    def __call__(self, x):
        B, C, H, W = x.shape
        assert C == self.in_channels, "channel mismatch"
        HW = H * W
        Cout = self.out_channels
        inv_hw = 1.0 / HW
        has_transition = self.in_channels != self.out_channels
        x3 = x.reshape(B, C, HW)                     # metadata-only reshape

        x_bytes = jnp.dtype(x.dtype).itemsize
        fused_bytes = (2 * C * HW * x_bytes          # x block, double-buffered
                       + 2 * Cout * HW * x_bytes     # out block, double-buffered
                       + Cout * HW * 4)              # f32 y intermediate
        if fused_bytes <= self.fuse_vmem_budget_bytes:
            out3 = self._fused(x3, has_transition, inv_hw, fused_bytes)
        else:
            out3 = self._split(x3, has_transition, inv_hw)
        return out3.reshape(B, Cout, H, W)

    # -------------------------- fused path ------------------------------
    def _fused(self, x3, has_transition, inv_hw, est_bytes):
        B, Cin, HW = x3.shape
        Cout, Csq = self.out_channels, self.csq

        x_spec = pl.BlockSpec((pl.Squeezed(), Cin, HW), lambda b: (b, 0, 0))
        o_spec = pl.BlockSpec((pl.Squeezed(), Cout, HW), lambda b: (b, 0, 0))
        fc_specs = [
            pl.BlockSpec((Csq, Cout), lambda b: (0, 0)),
            pl.BlockSpec((Csq, 1), lambda b: (0, 0)),
            pl.BlockSpec((Cout, Csq), lambda b: (0, 0)),
            pl.BlockSpec((Cout, 1), lambda b: (0, 0)),
        ]
        if has_transition:
            kernel = functools.partial(_se_fused_transition_kernel,
                                       pool=self.pool, inv_hw=inv_hw)
            in_specs = [x_spec,
                        pl.BlockSpec((Cout, Cin), lambda b: (0, 0)),
                        pl.BlockSpec((Cout, 1), lambda b: (0, 0))] + fc_specs
            args = (x3, self._w_fold, self._shift_col,
                    self.w1, self._b1_col, self.w2, self._b2_col)
        else:
            kernel = functools.partial(_se_fused_identity_kernel,
                                       pool=self.pool, inv_hw=inv_hw)
            in_specs = [x_spec] + fc_specs
            args = (x3, self.w1, self._b1_col, self.w2, self._b2_col)

        return pl.pallas_call(
            kernel,
            out_shape=jax.ShapeDtypeStruct((B, Cout, HW), x3.dtype),
            grid_spec=pltpu.PrefetchScalarGridSpec(
                num_scalar_prefetch=0, grid=(B,),
                in_specs=in_specs, out_specs=o_spec),
            compiler_params=_compiler_params(("parallel",), est_bytes),
        )(*args)

    # -------------------------- split path ------------------------------
    def _split(self, x3, has_transition, inv_hw):
        B, Cin, HW = x3.shape
        Cout, Csq = self.out_channels, self.csq
        xb = jnp.dtype(x3.dtype).itemsize
        tco = self.split_cout_tile or _pick_cout_tile(
            Cout, Cin, HW, xb, self.split_vmem_budget_bytes)
        assert Cout % tco == 0 and (tco % 8 == 0 or tco == Cout), \
            "split_cout_tile must divide Cout and be a multiple of 8 (or Cout)"
        n_co = Cout // tco
        est = 2 * Cin * HW * xb + tco * HW * (4 * xb + 8)
        cp = _compiler_params(("parallel", "parallel"), est)

        if has_transition:
            # Kernel A: transition conv (+folded BN) + ReLU + pooling per tile.
            y3, pooled = pl.pallas_call(
                functools.partial(_split_transition_pool_kernel,
                                  pool=self.pool, inv_hw=inv_hw),
                out_shape=(jax.ShapeDtypeStruct((B, Cout, HW), x3.dtype),
                           jax.ShapeDtypeStruct((B, Cout, 1), jnp.float32)),
                grid_spec=pltpu.PrefetchScalarGridSpec(
                    num_scalar_prefetch=0, grid=(B, n_co),
                    in_specs=[
                        pl.BlockSpec((pl.Squeezed(), Cin, HW),
                                     lambda b, c: (b, 0, 0)),
                        pl.BlockSpec((tco, Cin), lambda b, c: (c, 0)),
                        pl.BlockSpec((tco, 1), lambda b, c: (c, 0)),
                    ],
                    out_specs=[
                        pl.BlockSpec((pl.Squeezed(), tco, HW),
                                     lambda b, c: (b, c, 0)),
                        pl.BlockSpec((pl.Squeezed(), tco, 1),
                                     lambda b, c: (b, c, 0)),
                    ]),
                compiler_params=cp,
            )(x3, self._w_fold, self._shift_col)
        else:
            y3 = x3
            pooled = pl.pallas_call(
                functools.partial(_split_pool_kernel,
                                  pool=self.pool, inv_hw=inv_hw),
                out_shape=jax.ShapeDtypeStruct((B, Cout, 1), jnp.float32),
                grid_spec=pltpu.PrefetchScalarGridSpec(
                    num_scalar_prefetch=0, grid=(B, n_co),
                    in_specs=[pl.BlockSpec((pl.Squeezed(), tco, HW),
                                           lambda b, c: (b, c, 0))],
                    out_specs=pl.BlockSpec((pl.Squeezed(), tco, 1),
                                           lambda b, c: (b, c, 0))),
                compiler_params=cp,
            )(x3)

        # Kernel B: FC (recomputed per tile from the full pooled vector) + rescale.
        return pl.pallas_call(
            _split_fc_rescale_kernel,
            out_shape=jax.ShapeDtypeStruct((B, Cout, HW), x3.dtype),
            grid_spec=pltpu.PrefetchScalarGridSpec(
                num_scalar_prefetch=0, grid=(B, n_co),
                in_specs=[
                    pl.BlockSpec((pl.Squeezed(), tco, HW),
                                 lambda b, c: (b, c, 0)),
                    pl.BlockSpec((pl.Squeezed(), Cout, 1),
                                 lambda b, c: (b, 0, 0)),
                    pl.BlockSpec((Csq, Cout), lambda b, c: (0, 0)),
                    pl.BlockSpec((Csq, 1), lambda b, c: (0, 0)),
                    pl.BlockSpec((tco, Csq), lambda b, c: (c, 0)),
                    pl.BlockSpec((tco, 1), lambda b, c: (c, 0)),
                ],
                out_specs=pl.BlockSpec((pl.Squeezed(), tco, HW),
                                       lambda b, c: (b, c, 0))),
            compiler_params=cp,
        )(y3, pooled, self.w1, self._b1_col, self.w2, self._b2_col)

    # -------------------------- reference -------------------------------
    def reference(self, x):
        xf = x.astype(jnp.float32)
        if self.in_channels != self.out_channels:
            y = jnp.einsum('oi,bihw->bohw', self.wt, xf)
            y = (y * self.bn_scale[None, :, None, None]
                 + self.bn_shift[None, :, None, None])
            xf = jnp.maximum(y, 0.0)
        if self.pool == "avgpool":
            pooled = xf.mean(axis=(2, 3))                      # (B, C)
        else:
            pooled = xf.max(axis=(2, 3))
        h = jnp.maximum(pooled @ self.w1.T + self.b1, 0.0)
        s = jax.nn.sigmoid(h @ self.w2.T + self.b2)            # (B, C)
        return (s[:, :, None, None] * xf).astype(x.dtype)


if __name__ == "__main__":
    key = jax.random.PRNGKey(0)
    kx, kp, kx2, kx3 = jax.random.split(key, 4)

    def check(name, out, ref, atol=2e-3, rtol=2e-3):
        assert out.shape == ref.shape, f"{name}: shape {out.shape} vs {ref.shape}"
        err = float(jnp.max(jnp.abs(out.astype(jnp.float32)
                                    - ref.astype(jnp.float32))))
        assert jnp.allclose(out, ref, atol=atol, rtol=rtol), \
            f"{name}: mismatch vs reference (max abs err {err})"

    # 1) in_channels != out_channels -> fully fused transition+pool+FC+rescale.
    B, Cin, Cout, H, W = 2, 4, 8, 16, 16
    x = jax.random.normal(kx, (B, Cin, H, W), jnp.float32)
    se = SqueezeExcitationPallas(Cin, Cout, reduction=4, key=kp)
    out = jax.block_until_ready(se(x))
    check("fused-transition", out, se.reference(x))

    # 2) in_channels == out_channels -> fused identity path.
    se2 = SqueezeExcitationPallas(Cout, Cout, reduction=4, key=kp)
    x2 = jax.random.normal(kx2, (B, Cout, H, W), jnp.float32)
    out2 = jax.block_until_ready(se2(x2))
    check("fused-identity", out2, se2.reference(x2))

    # 3) non-128-multiple spatial size (7x7): no padding, block last dim = HW.
    x7 = jax.random.normal(kx3, (B, Cin, 7, 7), jnp.float32)
    out7 = jax.block_until_ready(se(x7))
    check("fused-transition-7x7", out7, se.reference(x7))

    # 4) maxpool variant (fused identity path).
    se_mx = SqueezeExcitationPallas(Cout, Cout, reduction=4, pool="maxpool",
                                    key=kp)
    out_mx = jax.block_until_ready(se_mx(x2))
    check("fused-identity-maxpool", out_mx, se_mx.reference(x2))

    # 5) forced split (channel-tiled fallback) path, transition + identity.
    se_sp = SqueezeExcitationPallas(8, 16, reduction=4, key=kp,
                                    fuse_vmem_budget_bytes=0,
                                    split_cout_tile=8)
    xs = jax.random.normal(kx, (B, 8, H, W), jnp.float32)
    out_sp = jax.block_until_ready(se_sp(xs))
    check("split-transition", out_sp, se_sp.reference(xs))

    se_sp2 = SqueezeExcitationPallas(16, 16, reduction=4, key=kp,
                                     fuse_vmem_budget_bytes=0,
                                     split_cout_tile=8)
    xs2 = jax.random.normal(kx2, (B, 16, H, W), jnp.float32)
    out_sp2 = jax.block_until_ready(se_sp2(xs2))
    check("split-identity", out_sp2, se_sp2.reference(xs2))

    print("KERNEL_OK")
</pallas_src>

<mosaic_0001>
module attributes {stable_mosaic.version = 11 : i64} {
  func.func @_se_fused_transition_kernel(%arg0: i32, %arg1: memref<1x4x256xf32, #tpu.memory_space<vmem>>, %arg2: memref<8x4xf32, #tpu.memory_space<vmem>>, %arg3: memref<8x1xf32, #tpu.memory_space<vmem>>, %arg4: memref<2x8xf32, #tpu.memory_space<vmem>>, %arg5: memref<2x1xf32, #tpu.memory_space<vmem>>, %arg6: memref<8x2xf32, #tpu.memory_space<vmem>>, %arg7: memref<8x1xf32, #tpu.memory_space<vmem>>, %arg8: memref<1x8x256xf32, #tpu.memory_space<vmem>>) attributes {dimension_semantics = [#tpu.dimension_semantics<parallel>], iteration_bounds = array<i64: 2>, scalar_prefetch = 0 : i64, scratch_operands = 0 : i64, tpu.core_type = #tpu.core_type<tc>, window_params = [{transform_indices = @transform_0, window_bounds = array<i64: 1, 4, 256>}, {pipeline_mode = #tpu.pipeline_mode<synchronous>, transform_indices = @transform_1, window_bounds = array<i64: 8, 4>}, {pipeline_mode = #tpu.pipeline_mode<synchronous>, transform_indices = @transform_2, window_bounds = array<i64: 8, 1>}, {pipeline_mode = #tpu.pipeline_mode<synchronous>, transform_indices = @transform_3, window_bounds = array<i64: 2, 8>}, {pipeline_mode = #tpu.pipeline_mode<synchronous>, transform_indices = @transform_4, window_bounds = array<i64: 2, 1>}, {pipeline_mode = #tpu.pipeline_mode<synchronous>, transform_indices = @transform_5, window_bounds = array<i64: 8, 2>}, {pipeline_mode = #tpu.pipeline_mode<synchronous>, transform_indices = @transform_6, window_bounds = array<i64: 8, 1>}, {transform_indices = @transform_7, window_bounds = array<i64: 1, 8, 256>}]} {
    %c0 = arith.constant 0 : index
    %c0_0 = arith.constant 0 : index
    %0 = vector.load %arg2[%c0, %c0_0] : memref<8x4xf32, #tpu.memory_space<vmem>>, vector<8x4xf32>
    %c0_1 = arith.constant 0 : index
    %c0_2 = arith.constant 0 : index
    %c0_3 = arith.constant 0 : index
    %1 = vector.load %arg1[%c0_1, %c0_2, %c0_3] : memref<1x4x256xf32, #tpu.memory_space<vmem>>, vector<1x4x256xf32>
    %2 = vector.shape_cast %1 : vector<1x4x256xf32> to vector<4x256xf32>
    %cst = arith.constant dense<0.000000e+00> : vector<8x256xf32>
    %3 = tpu.matmul %0, %2, %cst {dimension_numbers = #tpu.dot_dimension_numbers<[1], [0], [0], [1], [0, 0, 1, 1], [], []>} : vector<8x4xf32>, vector<4x256xf32>, vector<8x256xf32> -> vector<8x256xf32>
    %c0_4 = arith.constant 0 : index
    %c0_5 = arith.constant 0 : index
    %4 = vector.load %arg3[%c0_4, %c0_5] : memref<8x1xf32, #tpu.memory_space<vmem>>, vector<8x1xf32>
    %5 = vector.broadcast %4 : vector<8x1xf32> to vector<8x256xf32>
    %6 = arith.addf %3, %5 : vector<8x256xf32>
    %cst_6 = arith.constant 0.000000e+00 : f32
    %7 = vector.broadcast %cst_6 : f32 to vector<8x256xf32>
    %8 = arith.maximumf %6, %7 : vector<8x256xf32>
    %cst_7 = arith.constant dense<0.000000e+00> : vector<8xf32>
    %9 = vector.multi_reduction <add>, %8, %cst_7 [1] : vector<8x256xf32> to vector<8xf32>
    %10 = vector.shape_cast %9 : vector<8xf32> to vector<8x1xf32>
    %cst_8 = arith.constant 3.906250e-03 : f32
    %11 = vector.broadcast %cst_8 : f32 to vector<8x1xf32>
    %12 = arith.mulf %10, %11 : vector<8x1xf32>
    %c0_9 = arith.constant 0 : index
    %c0_10 = arith.constant 0 : index
    %13 = vector.load %arg4[%c0_9, %c0_10] : memref<2x8xf32, #tpu.memory_space<vmem>>, vector<2x8xf32>
    %cst_11 = arith.constant dense<0.000000e+00> : vector<2x1xf32>
    %14 = tpu.matmul %13, %12, %cst_11 {dimension_numbers = #tpu.dot_dimension_numbers<[1], [0], [0], [1], [0, 0, 1, 1], [], []>} : vector<2x8xf32>, vector<8x1xf32>, vector<2x1xf32> -> vector<2x1xf32>
    %c0_12 = arith.constant 0 : index
    %c0_13 = arith.constant 0 : index
    %15 = vector.load %arg5[%c0_12, %c0_13] : memref<2x1xf32, #tpu.memory_space<vmem>>, vector<2x1xf32>
    %16 = arith.addf %14, %15 : vector<2x1xf32>
    %cst_14 = arith.constant 0.000000e+00 : f32
    %17 = vector.broadcast %cst_14 : f32 to vector<2x1xf32>
    %18 = arith.maximumf %16, %17 : vector<2x1xf32>
    %c0_15 = arith.constant 0 : index
    %c0_16 = arith.constant 0 : index
    %19 = vector.load %arg6[%c0_15, %c0_16] : memref<8x2xf32, #tpu.memory_space<vmem>>, vector<8x2xf32>
    %cst_17 = arith.constant dense<0.000000e+00> : vector<8x1xf32>
    %20 = tpu.matmul %19, %18, %cst_17 {dimension_numbers = #tpu.dot_dimension_numbers<[1], [0], [0], [1], [0, 0, 1, 1], [], []>} : vector<8x2xf32>, vector<2x1xf32>, vector<8x1xf32> -> vector<8x1xf32>
    %c0_18 = arith.constant 0 : index
    %c0_19 = arith.constant 0 : index
    %21 = vector.load %arg7[%c0_18, %c0_19] : memref<8x1xf32, #tpu.memory_space<vmem>>, vector<8x1xf32>
    %22 = arith.addf %20, %21 : vector<8x1xf32>
    %23 = arith.negf %22 : vector<8x1xf32>
    %24 = math.exp %23 : vector<8x1xf32>
    %cst_20 = arith.constant 1.000000e+00 : f32
    %25 = vector.broadcast %cst_20 : f32 to vector<8x1xf32>
    %26 = arith.addf %25, %24 : vector<8x1xf32>
    %27 = arith.divf %25, %26 : vector<8x1xf32>
    %28 = vector.broadcast %27 : vector<8x1xf32> to vector<8x256xf32>
    %29 = arith.mulf %8, %28 : vector<8x256xf32>
    %c0_21 = arith.constant 0 : index
    %c0_22 = arith.constant 0 : index
    %c0_23 = arith.constant 0 : index
    %30 = vector.load %arg8[%c0_21, %c0_22, %c0_23] : memref<1x8x256xf32, #tpu.memory_space<vmem>>, vector<1x8x256xf32>
    %31 = vector.shape_cast %30 : vector<1x8x256xf32> to vector<8x256xf32>
    %32 = vector.shape_cast %29 : vector<8x256xf32> to vector<1x8x256xf32>
    tpu.vector_store %arg8[%c0_21, %c0_22, %c0_23], %32 {strides = array<i32>} : memref<1x8x256xf32, #tpu.memory_space<vmem>>, vector<1x8x256xf32>,
    return
  }
  func.func @transform_0(%arg0: i32) -> (i32, i32, i32) {
    %c0_i32 = arith.constant 0 : i32
    %c0_i32_0 = arith.constant 0 : i32
    %c0_i32_1 = arith.constant 0 : i32
    return %arg0, %c0_i32, %c0_i32_0 : i32, i32, i32
  }
  func.func @transform_1(%arg0: i32) -> (i32, i32) {
    %c0_i32 = arith.constant 0 : i32
    %c0_i32_0 = arith.constant 0 : i32
    %c0_i32_1 = arith.constant 0 : i32
    return %c0_i32, %c0_i32_0 : i32, i32
  }
  func.func @transform_2(%arg0: i32) -> (i32, i32) {
    %c0_i32 = arith.constant 0 : i32
    %c0_i32_0 = arith.constant 0 : i32
    %c0_i32_1 = arith.constant 0 : i32
    return %c0_i32, %c0_i32_0 : i32, i32
  }
  func.func @transform_3(%arg0: i32) -> (i32, i32) {
    %c0_i32 = arith.constant 0 : i32
    %c0_i32_0 = arith.constant 0 : i32
    %c0_i32_1 = arith.constant 0 : i32
    return %c0_i32, %c0_i32_0 : i32, i32
  }
  func.func @transform_4(%arg0: i32) -> (i32, i32) {
    %c0_i32 = arith.constant 0 : i32
    %c0_i32_0 = arith.constant 0 : i32
    %c0_i32_1 = arith.constant 0 : i32
    return %c0_i32, %c0_i32_0 : i32, i32
  }
  func.func @transform_5(%arg0: i32) -> (i32, i32) {
    %c0_i32 = arith.constant 0 : i32
    %c0_i32_0 = arith.constant 0 : i32
    %c0_i32_1 = arith.constant 0 : i32
    return %c0_i32, %c0_i32_0 : i32, i32
  }
  func.func @transform_6(%arg0: i32) -> (i32, i32) {
    %c0_i32 = arith.constant 0 : i32
    %c0_i32_0 = arith.constant 0 : i32
    %c0_i32_1 = arith.constant 0 : i32
    return %c0_i32, %c0_i32_0 : i32, i32
  }
  func.func @transform_7(%arg0: i32) -> (i32, i32, i32) {
    %c0_i32 = arith.constant 0 : i32
    %c0_i32_0 = arith.constant 0 : i32
    %c0_i32_1 = arith.constant 0 : i32
    return %arg0, %c0_i32, %c0_i32_0 : i32, i32, i32
  }
}

</mosaic_0001>

<llo_original>
// kernel: tpu_custom_call.1
$region0: #{tpu_custom_call.1}
  #allocation0 [shape = 'u32[]', space=smem, size = 0x4, offset = 0x4, fixed_abs, tag = 'smem constant byte address 0x4 - core index']
  #allocation1 [shape = 'u32[72,128]{1,0:T(1,128)}', space=vmem, size = 0x9000, scoped, tag = 'internal scratch']
  %s0 = inlined_call_operand.vmem [shape: f32[2,4,256], index: 0, kind: input, shape index: {}]
  %s1 = inlined_call_operand.vmem [shape: f32[8,4], index: 1, kind: input, shape index: {}]
  %s2 = inlined_call_operand.vmem [shape: f32[8,1], index: 2, kind: input, shape index: {}]
  %s3 = inlined_call_operand.vmem [shape: f32[2,8], index: 3, kind: input, shape index: {}]
  %s4 = inlined_call_operand.vmem [shape: f32[2,1], index: 4, kind: input, shape index: {}]
  %s5 = inlined_call_operand.vmem [shape: f32[8,2], index: 5, kind: input, shape index: {}]
  %s6 = inlined_call_operand.vmem [shape: f32[8,1], index: 6, kind: input, shape index: {}]
  %s7 = inlined_call_operand.hbm [shape: f32[2,8,256], index: 7, kind: output, shape index: {}]
  %s8 = sld [smem:[#allocation0]]
  $region61: #{tpu_custom_call.1} parent=0
    _
  %s10 = ssub.s32 1, %s8
  %s11 = scalar_select 0, %s10, %s8
  $region1: #{tpu_custom_call.1} parent=0
    #allocation2 [shape = 'u8[16384]{0}', space=vmem, size = 0x4000, scoped, tag = 'output window, operand 0']
    #allocation3 [shape = 's32[2]{0}', space=sflag, size = 0x8, scoped, tag = 'scoped memory for tpu_custom_call.1']
    %12 = vsyncpa [#allocation3], 0
    %s13 = scalar_lea.sflag [#allocation3], 1
    %14 = vsyncpa %s13, 0
    loop: start=0, step=1, limit=4
    $region2: #{tpu_custom_call.1} parent=1 // loop_pre_header
      _
    $region3: #{tpu_custom_call.1} parent=1 // loop_header
      %s16 = sphi 0, %s20
      %p17 = scmp.ge.s32.totalorder %s16, 4
      %s26 = sphi 0, %s28
      %s29 = sphi 0, %s26
      %s30 = sphi 0, %s29
      %s46 = sphi 0, %s30
      %s50 = sphi 0, %s50
      %s52 = sphi 0, %s50
      %s53 = sphi 0, %s52
      %s67 = sphi 0, %s53
      %s71 = sphi 0, %s71
      %s73 = sphi 0, %s71
      %s74 = sphi 0, %s73
      %s88 = sphi 0, %s74
      %s92 = sphi 0, %s92
      %s94 = sphi 0, %s92
      %s95 = sphi 0, %s94
      %s109 = sphi 0, %s95
      %s113 = sphi 0, %s113
      %s115 = sphi 0, %s113
      %s116 = sphi 0, %s115
      %s130 = sphi 0, %s116
      %s134 = sphi 0, %s134
      %s136 = sphi 0, %s134
      %s137 = sphi 0, %s136
      %s151 = sphi 0, %s137
      %s155 = sphi 0, %s155
      %s157 = sphi 0, %s155
      %s158 = sphi 0, %s157
      %s172 = sphi 0, %s158
      %s178 = sphi 0, %s180
      %s181 = sphi 0, %s178
      %s182 = sphi 0, %s181
      %s198 = sphi 0, %s182
    $region4: #{tpu_custom_call.1} parent=1 // loop_header_branch
      %19 = sbr.rel (%p17) target = $region8
    $region5: #{tpu_custom_call.1} parent=1 // loop_body
      %s21 = ssub.s32 %s16, 1
      %s22 = ssub.s32 %s16, 2
      %s23 = sadd.s32 %s16, 1
      %s24 = ssub.s32 %s16, %s23
      %p25 = scmp.eq.s32.totalorder %s24, 0
      %s27 = sadd.s32 %s26, 1
      %s28 = scalar_select %p25, %s26, %s27
      %p31 = pneg %p25
      %p32 = scmp.eq.s32.totalorder %s16, 1
      %p33 = por %p31, %p32
      %p34 = scmp.ne.s32.totalorder %s26, %s29
      %p35 = scmp.eq.s32.totalorder %s16, 0
      %p36 = por %p34, %p35
      %p37 = scmp.ne.s32.totalorder %s26, %s29
      %p38 = scmp.eq.s32.totalorder %s21, 1
      %p39 = por %p37, %p38
      %p40 = scmp.ne.s32.totalorder %s29, %s30
      %p41 = scmp.eq.s32.totalorder %s21, 0
      %p42 = por %p40, %p41
      %p43 = scmp.ne.s32.totalorder %s29, %s30
      %p44 = scmp.eq.s32.totalorder %s22, 1
      %p45 = por %p43, %p44
      %p47 = scmp.ne.s32.totalorder %s30, %s46
      %p48 = scmp.eq.s32.totalorder %s22, 0
      %p49 = por %p47, %p48
      %s51 = sadd.s32 %s50, 1
      %p54 = scmp.eq.s32.totalorder %s16, 1
      %p55 = scmp.ne.s32.totalorder %s50, %s52
      %p56 = scmp.eq.s32.totalorder %s16, 0
      %p57 = por %p55, %p56
      %p58 = scmp.ne.s32.totalorder %s50, %s52
      %p59 = scmp.eq.s32.totalorder %s21, 1
      %p60 = por %p58, %p59
      %p61 = scmp.ne.s32.totalorder %s52, %s53
      %p62 = scmp.eq.s32.totalorder %s21, 0
      %p63 = por %p61, %p62
      %p64 = scmp.ne.s32.totalorder %s52, %s53
      %p65 = scmp.eq.s32.totalorder %s22, 1
      %p66 = por %p64, %p65
      %p68 = scmp.ne.s32.totalorder %s53, %s67
      %p69 = scmp.eq.s32.totalorder %s22, 0
      %p70 = por %p68, %p69
      %s72 = sadd.s32 %s71, 1
      %p75 = scmp.eq.s32.totalorder %s16, 1
      %p76 = scmp.ne.s32.totalorder %s71, %s73
      %p77 = scmp.eq.s32.totalorder %s16, 0
      %p78 = por %p76, %p77
      %p79 = scmp.ne.s32.totalorder %s71, %s73
      %p80 = scmp.eq.s32.totalorder %s21, 1
      %p81 = por %p79, %p80
      %p82 = scmp.ne.s32.totalorder %s73, %s74
      %p83 = scmp.eq.s32.totalorder %s21, 0
      %p84 = por %p82, %p83
      %p85 = scmp.ne.s32.totalorder %s73, %s74
      %p86 = scmp.eq.s32.totalorder %s22, 1
      %p87 = por %p85, %p86
      %p89 = scmp.ne.s32.totalorder %s74, %s88
      %p90 = scmp.eq.s32.totalorder %s22, 0
      %p91 = por %p89, %p90
      %s93 = sadd.s32 %s92, 1
      %p96 = scmp.eq.s32.totalorder %s16, 1
      %p97 = scmp.ne.s32.totalorder %s92, %s94
      %p98 = scmp.eq.s32.totalorder %s16, 0
      %p99 = por %p97, %p98
      %p100 = scmp.ne.s32.totalorder %s92, %s94
      %p101 = scmp.eq.s32.totalorder %s21, 1
      %p102 = por %p100, %p101
      %p103 = scmp.ne.s32.totalorder %s94, %s95
      %p104 = scmp.eq.s32.totalorder %s21, 0
      %p105 = por %p103, %p104
      %p106 = scmp.ne.s32.totalorder %s94, %s95
      %p107 = scmp.eq.s32.totalorder %s22, 1
      %p108 = por %p106, %p107
      %p110 = scmp.ne.s32.totalorder %s95, %s109
      %p111 = scmp.eq.s32.totalorder %s22, 0
      %p112 = por %p110, %p111
      %s114 = sadd.s32 %s113, 1
      %p117 = scmp.eq.s32.totalorder %s16, 1
      %p118 = scmp.ne.s32.totalorder %s113, %s115
      %p119 = scmp.eq.s32.totalorder %s16, 0
      %p120 = por %p118, %p119
      %p121 = scmp.ne.s32.totalorder %s113, %s115
      %p122 = scmp.eq.s32.totalorder %s21, 1
      %p123 = por %p121, %p122
      %p124 = scmp.ne.s32.totalorder %s115, %s116
      %p125 = scmp.eq.s32.totalorder %s21, 0
      %p126 = por %p124, %p125
      %p127 = scmp.ne.s32.totalorder %s115, %s116
      %p128 = scmp.eq.s32.totalorder %s22, 1
      %p129 = por %p127, %p128
      %p131 = scmp.ne.s32.totalorder %s116, %s130
      %p132 = scmp.eq.s32.totalorder %s22, 0
      %p133 = por %p131, %p132
      %s135 = sadd.s32 %s134, 1
      %p138 = scmp.eq.s32.totalorder %s16, 1
      %p139 = scmp.ne.s32.totalorder %s134, %s136
      %p140 = scmp.eq.s32.totalorder %s16, 0
      %p141 = por %p139, %p140
      %p142 = scmp.ne.s32.totalorder %s134, %s136
      %p143 = scmp.eq.s32.totalorder %s21, 1
      %p144 = por %p142, %p143
      %p145 = scmp.ne.s32.totalorder %s136, %s137
      %p146 = scmp.eq.s32.totalorder %s21, 0
      %p147 = por %p145, %p146
      %p148 = scmp.ne.s32.totalorder %s136, %s137
      %p149 = scmp.eq.s32.totalorder %s22, 1
      %p150 = por %p148, %p149
      %p152 = scmp.ne.s32.totalorder %s137, %s151
      %p153 = scmp.eq.s32.totalorder %s22, 0
      %p154 = por %p152, %p153
      %s156 = sadd.s32 %s155, 1
      %p159 = scmp.eq.s32.totalorder %s16, 1
      %p160 = scmp.ne.s32.totalorder %s155, %s157
      %p161 = scmp.eq.s32.totalorder %s16, 0
      %p162 = por %p160, %p161
      %p163 = scmp.ne.s32.totalorder %s155, %s157
      %p164 = scmp.eq.s32.totalorder %s21, 1
      %p165 = por %p163, %p164
      %p166 = scmp.ne.s32.totalorder %s157, %s158
      %p167 = scmp.eq.s32.totalorder %s21, 0
      %p168 = por %p166, %p167
      %p169 = scmp.ne.s32.totalorder %s157, %s158
      %p170 = scmp.eq.s32.totalorder %s22, 1
      %p171 = por %p169, %p170
      %p173 = scmp.ne.s32.totalorder %s158, %s172
      %p174 = scmp.eq.s32.totalorder %s22, 0
      %p175 = por %p173, %p174
      %s176 = ssub.s32 %s16, %s23
      %p177 = scmp.eq.s32.totalorder %s176, 0
      %s179 = sadd.s32 %s178, 1
      %s180 = scalar_select %p177, %s178, %s179
      %p183 = pneg %p177
      %p184 = scmp.eq.s32.totalorder %s16, 1
      %p185 = por %p183, %p184
      %p186 = scmp.ne.s32.totalorder %s178, %s181
      %p187 = scmp.eq.s32.totalorder %s16, 0
      %p188 = por %p186, %p187
      %p189 = scmp.ne.s32.totalorder %s178, %s181
      %p190 = scmp.eq.s32.totalorder %s21, 1
      %p191 = por %p189, %p190
      %p192 = scmp.ne.s32.totalorder %s181, %s182
      %p193 = scmp.eq.s32.totalorder %s21, 0
      %p194 = por %p192, %p193
      %p195 = scmp.ne.s32.totalorder %s181, %s182
      %p196 = scmp.eq.s32.totalorder %s22, 1
      %p197 = por %p195, %p196
      %p199 = scmp.ne.s32.totalorder %s182, %s198
      %p200 = scmp.eq.s32.totalorder %s22, 0
      %p201 = por %p199, %p200
      %p202 = scmp.le.s32.totalorder 1, %s16
      %p203 = scmp.lt.s32.totalorder %s16, 3
      %p204 = pnand %p202, %p203
      %p205 = pneg %p204
      // Predicated region
      $region9: #{tpu_custom_call.1} parent=5 // pred_check
        _
      $region10: #{tpu_custom_call.1} parent=5 // pred_check_branch
        %207 = sbr.rel (%p204) target = $region12
      $region11: #{tpu_custom_call.1} parent=5 // pred_region
        %s208 = ssub.s32 %s16, 1
        // Predicated region
        $region13: #{tpu_custom_call.1} parent=11 // pred_check
          %p209 = pneg %p63
        $region14: #{tpu_custom_call.1} parent=11 // pred_check_branch
          %211 = sbr.rel (%p209) target = $region16
        $region15: #{tpu_custom_call.1} parent=11 // pred_region
          _
        $region16: #{tpu_custom_call.1} parent=11 // pred_fallthru
          _
        // Predicated region
        $region17: #{tpu_custom_call.1} parent=11 // pred_check
          %p212 = pneg %p84
        $region18: #{tpu_custom_call.1} parent=11 // pred_check_branch
          %214 = sbr.rel (%p212) target = $region20
        $region19: #{tpu_custom_call.1} parent=11 // pred_region
          _
        $region20: #{tpu_custom_call.1} parent=11 // pred_fallthru
          _
        // Predicated region
        $region21: #{tpu_custom_call.1} parent=11 // pred_check
          %p215 = pneg %p105
        $region22: #{tpu_custom_call.1} parent=11 // pred_check_branch
          %217 = sbr.rel (%p215) target = $region24
        $region23: #{tpu_custom_call.1} parent=11 // pred_region
          _
        $region24: #{tpu_custom_call.1} parent=11 // pred_fallthru
          _
        // Predicated region
        $region25: #{tpu_custom_call.1} parent=11 // pred_check
          %p218 = pneg %p126
        $region26: #{tpu_custom_call.1} parent=11 // pred_check_branch
          %220 = sbr.rel (%p218) target = $region28
        $region27: #{tpu_custom_call.1} parent=11 // pred_region
          _
        $region28: #{tpu_custom_call.1} parent=11 // pred_fallthru
          _
        // Predicated region
        $region29: #{tpu_custom_call.1} parent=11 // pred_check
          %p221 = pneg %p147
        $region30: #{tpu_custom_call.1} parent=11 // pred_check_branch
          %223 = sbr.rel (%p221) target = $region32
        $region31: #{tpu_custom_call.1} parent=11 // pred_region
          _
        $region32: #{tpu_custom_call.1} parent=11 // pred_fallthru
          _
        // Predicated region
        $region33: #{tpu_custom_call.1} parent=11 // pred_check
          %p224 = pneg %p168
        $region34: #{tpu_custom_call.1} parent=11 // pred_check_branch
          %226 = sbr.rel (%p224) target = $region36
        $region35: #{tpu_custom_call.1} parent=11 // pred_region
          _
        $region36: #{tpu_custom_call.1} parent=11 // pred_fallthru
          _
      $region12: #{tpu_custom_call.1} parent=5 // pred_fallthru
        _
      %p227 = scmp.lt.s32.totalorder %s16, 2
      // Predicated region
      $region37: #{tpu_custom_call.1} parent=5 // pred_check
        %p228 = pneg %p227
      $region38: #{tpu_custom_call.1} parent=5 // pred_check_branch
        %230 = sbr.rel (%p228) target = $region40
      $region39: #{tpu_custom_call.1} parent=5 // pred_region
        // Predicated region
        $region41: #{tpu_custom_call.1} parent=39 // pred_check
          %p231 = pneg %p36
        $region42: #{tpu_custom_call.1} parent=39 // pred_check_branch
          %233 = sbr.rel (%p231) target = $region44
        $region43: #{tpu_custom_call.1} parent=39 // pred_region
          %p234 = scmp.lt.s32.totalorder %s16, 1
          %s235 = scalar_select %p234, %s16, 1
          %s236 = smul.addr %s235, 2
          %s237 = smul.addr %s236, 4
          %s238 = scalar_lea.vmem %s0, %s237
        $region44: #{tpu_custom_call.1} parent=39 // pred_fallthru
          _
      $region40: #{tpu_custom_call.1} parent=5 // pred_fallthru
        _
      %p239 = scmp.le.s32.totalorder 1, %s16
      %p240 = scmp.lt.s32.totalorder %s16, 3
      %p241 = pnand %p239, %p240
      %p242 = pneg %p241
      // Predicated region
      $region45: #{tpu_custom_call.1} parent=5 // pred_check
        _
      $region46: #{tpu_custom_call.1} parent=5 // pred_check_branch
        %244 = sbr.rel (%p241) target = $region48
      $region47: #{tpu_custom_call.1} parent=5 // pred_region
        %s245 = ssub.s32 %s16, 1
        %p246 = scmp.lt.s32.totalorder %s21, 1
        %s247 = scalar_select %p246, %s21, 1
        %s248 = smul.addr %s247, 2
        %s249 = smul.addr %s248, 4
        %s250 = scalar_lea.vmem %s0, %s249
        %p251 = pneg %p42
        %p252 = pneg %p39
        %p253 = pneg %p63
        %p254 = pneg %p60
        %p255 = pneg %p84
        %p256 = pneg %p81
        %p257 = pneg %p105
        %p258 = pneg %p102
        %p259 = pneg %p126
        %p260 = pneg %p123
        %p261 = pneg %p147
        %p262 = pneg %p144
        %p263 = pneg %p168
        %p264 = pneg %p165
        %p265 = pneg %p194
        %p266 = pneg %p191
        %s267 = sand.u32 %s181, 1
        %s268 = scalar_lea.sflag [#allocation3], %s267
        %s269 = sand.u32 %s181, 1
        %s270 = smul.addr %s269, 16
        %s271 = scalar_lea.vmem [#allocation2], %s270
        %p272 = scmp.lt.s32.totalorder %s21, 1
        %s273 = scalar_select %p272, %s21, 1
        %s274 = smul.addr %s273, 2
        %s275 = smul.addr %s274, 4
        %s276 = scalar_lea.vmem %s0, %s275
        %v277 = vld [vmem:[%s1] sm:$0xff]
        %v278 = vld [vmem:[%s276] sm:$0xff]
        %v279 = vld [vmem:[%s2] sm:$0xff]
        %281 = vset.pattern.permute.xlu0 0
        %282 = vperm.xlu0 %281, %v279
        %v283 = vpop.permute.xlu0 %282
        %286 = vst [vmem:[#allocation1] ss:$2 sm:$0xff] %v278
        %v287 = vld.sshfl [vmem:[#allocation1] sm:$0xff pattern:$0x75316420]
        %v288 = vld.sshfl [vmem:[#allocation1 + $0x8] sm:$0xff pattern:$0x75316420]
        %vm289 = vcmask 31744
        %v291 = vsel %vm289, %v277, 0
        %vm293 = vcmask 1043456
        %v294 = vsel %vm293, %v287, 0
        %v296 = vsel %vm293, %v288, 0
        %298 = vmatpush.msra.mxu0 0.0
        %299 = vmatpush.msra.mxu0 0.0
        %300 = vmatpush.msra.mxu0 0.0
        %301 = vmatpush.msra.mxu0 0.0
        %302 = vmatpush.msra.mxu0 0.0
        %303 = vmatpush.msra.mxu0 0.0
        %304 = vmatpush.msra.mxu0 0.0
        %305 = vmatpush.msra.mxu0 0.0
        %306 = vmatpush.msra.mxu0 0.0
        %307 = vmatpush.msra.mxu0 0.0
        %308 = vmatpush.msra.mxu0 0.0
        %309 = vmatpush.msra.mxu0 0.0
        %310 = vmatpush.msra.mxu0 0.0
        %311 = vmatpush.msra.mxu0 0.0
        %312 = vmatpush.msra.mxu0 0.0
        %313 = vmatpush.msra.mxu0 %v294
        %314 = vmatmul.f32.gmra.mxu0 %v291
        %v315 = vpop.f32.mrf.mxu0
        %v316 = vadd.f32 %v283, %v315
        %317 = vdwg.mxu0
        %318 = vmatpush.msra.mxu0 0.0
        %319 = vmatpush.msra.mxu0 0.0
        %320 = vmatpush.msra.mxu0 0.0
        %321 = vmatpush.msra.mxu0 0.0
        %322 = vmatpush.msra.mxu0 0.0
        %323 = vmatpush.msra.mxu0 0.0
        %324 = vmatpush.msra.mxu0 0.0
        %325 = vmatpush.msra.mxu0 0.0
        %326 = vmatpush.msra.mxu0 0.0
        %327 = vmatpush.msra.mxu0 0.0
        %328 = vmatpush.msra.mxu0 0.0
        %329 = vmatpush.msra.mxu0 0.0
        %330 = vmatpush.msra.mxu0 0.0
        %331 = vmatpush.msra.mxu0 0.0
        %332 = vmatpush.msra.mxu0 0.0
        %333 = vmatpush.msra.mxu0 %v296
        %334 = vmatmul.f32.gmra.mxu0 %v291
        %v335 = vpop.f32.mrf.mxu0
        %v336 = vadd.f32 %v283, %v335
        %337 = vdwg.mxu0
        %v338 = vmax.f32 %v316, 0.0
        %v339 = vmax.f32 %v336, 0.0
        %v340 = vadd.f32 %v338, %v339
        %341 = vadd.xlane.f32.xlu0 %v340
        %v342 = vpop.xlane.xlu0 %341
        %v343 = vmul.f32 %v342, 0.00390625
        %v344 = vld [vmem:[%s3] sm:$0x3]
        %v345 = vld [vmem:[%s4] sm:$0x3]
        %vm346 = vcmask 64512
        %v348 = vsel %vm346, %v344, 0
        %350 = vmatpush.msra.mxu0 0.0
        %351 = vmatpush.msra.mxu0 0.0
        %352 = vmatpush.msra.mxu0 0.0
        %353 = vmatpush.msra.mxu0 0.0
        %354 = vmatpush.msra.mxu0 0.0
        %355 = vmatpush.msra.mxu0 0.0
        %356 = vmatpush.msra.mxu0 0.0
        %357 = vmatpush.msra.mxu0 0.0
        %358 = vmatpush.msra.mxu0 0.0
        %359 = vmatpush.msra.mxu0 0.0
        %360 = vmatpush.msra.mxu0 0.0
        %361 = vmatpush.msra.mxu0 0.0
        %362 = vmatpush.msra.mxu0 0.0
        %363 = vmatpush.msra.mxu0 0.0
        %364 = vmatpush.msra.mxu0 0.0
        %365 = vmatpush.msra.mxu0 %v343
        %366 = vmatmul.f32.gmra.mxu0 %v348
        %v367 = vpop.f32.mrf.mxu0
        %v368 = vadd.f32 %v345, %v367
        %369 = vdwg.mxu0
        %v370 = vmax.f32 %v368, 0.0
        %v371 = vld [vmem:[%s5] sm:$0xff]
        %v372 = vld [vmem:[%s6] sm:$0xff]
        %vm373 = vcmask 15360
        %v375 = vsel %vm373, %v371, 0
        %vm377 = vcmask 1041408
        %v379 = vsel %vm377, %v370, 0
        %381 = vmatpush.msra.mxu0 0.0
        %382 = vmatpush.msra.mxu0 0.0
        %383 = vmatpush.msra.mxu0 0.0
        %384 = vmatpush.msra.mxu0 0.0
        %385 = vmatpush.msra.mxu0 0.0
        %386 = vmatpush.msra.mxu0 0.0
        %387 = vmatpush.msra.mxu0 0.0
        %388 = vmatpush.msra.mxu0 0.0
        %389 = vmatpush.msra.mxu0 0.0
        %390 = vmatpush.msra.mxu0 0.0
        %391 = vmatpush.msra.mxu0 0.0
        %392 = vmatpush.msra.mxu0 0.0
        %393 = vmatpush.msra.mxu0 0.0
        %394 = vmatpush.msra.mxu0 0.0
        %395 = vmatpush.msra.mxu0 0.0
        %396 = vmatpush.msra.mxu0 %v379
        %397 = vmatmul.f32.gmra.mxu0 %v375
        %v398 = vpop.f32.mrf.mxu0
        %v399 = vadd.f32 %v372, %v398
        %400 = vdwg.mxu0
        %v401 = vxor.u32 %v399, 2147483648
        %v402 = vmul.f32 %v401, 1.442695
        %v403 = vpow.pop %v402
        %v404 = vadd.f32 %v403, 1.0
        %v405 = vrcp.pop %v404
        %v406 = vmul.f32 %v404, %v405
        %v407 = vsub.f32 1.0, %v406
        %v408 = vmul.f32 %v405, %v407
        %v409 = vadd.f32 %v405, %v408
        %vm410 = vweird.f32 %v404
        %vm411 = vweird.f32 %v405
        %vm412 = vmor %vm410, %vm411
        %v413 = vsel %vm412, %v405, %v409
        %v414 = vand.u32 2147483647, %v404
        %vm415 = vcmp.eq.f32.partialorder %v414, 8.507059e+37
        %v416 = vand.u32 %v404, 2147483648
        %v417 = vor.u32 1.1754944e-38, %v416
        %v418 = vsel %vm415, %v417, %v413
        %v419 = vmul.f32 1.0, %v418
        %421 = vset.pattern.permute.xlu0 0
        %422 = vperm.xlu0 %421, %v419
        %v423 = vpop.permute.xlu0 %422
        %v425 = vmul.f32 %v338, %v423
        %v426 = vmul.f32 %v339, %v423
        %427 = vst [vmem:[%s271] sm:$0xff] %v425
        %428 = vst [vmem:[%s271 + $0x8] sm:$0xff] %v426
        %s429 = sand.u32 %s181, 1
        %s430 = scalar_lea.sflag [#allocation3], %s429
        %s431 = sand.u32 %s181, 1
        %s432 = smul.addr %s431, 16
        %s433 = scalar_lea.vmem [#allocation2], %s432
        // Predicated region
        $region49: #{tpu_custom_call.1} parent=47 // pred_check
          %p434 = pneg %p191
        $region50: #{tpu_custom_call.1} parent=47 // pred_check_branch
          %436 = sbr.rel (%p434) target = $region52
        $region51: #{tpu_custom_call.1} parent=47 // pred_region
          %438 = vsyncadd %s430, 0
          %s439 = smul.addr %s21, 2
          %s440 = smul.addr %s439, 8
          %s441 = scalar_lea.hbm %s7, %s440
          %s443 = sshll.u32 %s433, 4
          %s444 = int_to_ptr.vmem [resolvable:$true] %s443
          %s445 = sshll.u32 %s441, 4
          %s446 = int_to_ptr.hbm [resolvable:$true] %s445
          %448 = dma.vmem_to_hbm [thread:$0]  %s444, 256, %s446, %s430
        $region52: #{tpu_custom_call.1} parent=47 // pred_fallthru
          _
      $region48: #{tpu_custom_call.1} parent=5 // pred_fallthru
        _
      %p449 = scmp.le.s32.totalorder 2, %s16
      // Predicated region
      $region53: #{tpu_custom_call.1} parent=5 // pred_check
        %p450 = pneg %p449
      $region54: #{tpu_custom_call.1} parent=5 // pred_check_branch
        %452 = sbr.rel (%p450) target = $region56
      $region55: #{tpu_custom_call.1} parent=5 // pred_region
        %s453 = ssub.s32 %s16, 2
        // Predicated region
        $region57: #{tpu_custom_call.1} parent=55 // pred_check
          %p454 = pneg %p197
        $region58: #{tpu_custom_call.1} parent=55 // pred_check_branch
          %456 = sbr.rel (%p454) target = $region60
        $region59: #{tpu_custom_call.1} parent=55 // pred_region
          %s457 = sand.u32 %s182, 1
          %s458 = scalar_lea.sflag [#allocation3], %s457
          %s459 = sand.u32 %s182, 1
          %s460 = smul.addr %s459, 16
          %s461 = scalar_lea.vmem [#allocation2], %s460
          %463 = dma.done %s458, 256
        $region60: #{tpu_custom_call.1} parent=55 // pred_fallthru
          _
      $region56: #{tpu_custom_call.1} parent=5 // pred_fallthru
        _
    $region6: #{tpu_custom_call.1} parent=1 // loop_footer
      %s20 = sadd.s32 1, %s16
    $region7: #{tpu_custom_call.1} parent=1 // loop_footer_branch
      %15 = sbr.rel target = $region3
    $region8: #{tpu_custom_call.1} parent=1 // loop_exit
      _
    %464 = vsyncpa [#allocation3], 1
    %s465 = scalar_lea.sflag [#allocation3], 1
    %466 = vsyncpa %s465, 1

</llo_original>
